<compile_context>
chip_gen: v6e
topology: v6e:2x2x1
jax: 0.10.0
libtpu: 0.0.40
codegen_flags: <defaults>
</compile_context>

<pallas_src>
import functools

import jax
import jax.numpy as jnp
from jax import lax
from jax.experimental import pallas as pl
from jax.experimental.pallas import tpu as pltpu


_LANE = 128
_MAX_TILE_ROWS = 1024
_TARGET_OUT_BLOCK_BYTES = 2 * 1024 * 1024   # per-buffer output block budget


def _deconv_relu_kernel(x_ref, w_ref, b_ref, o_ref):
    # x_ref: (Cin, TS)  compute dtype (bf16/f32)
    # w_ref: (Cin, Npad) compute dtype
    # b_ref: (1, Npad)  f32
    # o_ref: (TS, Npad) out dtype
    y = lax.dot_general(
        x_ref[...], w_ref[...],
        dimension_numbers=(((0,), (0,)), ((), ())),   # contract Cin (dim 0 of both)
        preferred_element_type=jnp.float32)           # (TS, Npad), f32 accumulation
    y = y + b_ref[...]                                # f32 epilogue
    o_ref[...] = jnp.maximum(y, 0.0).astype(o_ref.dtype)


def _spatial_tile(s, n_pad, out_elem_bytes):
    """Fixed, capped row tile: a multiple of 128 rows, at most 1024, sized so the
    output block stays ~<=2 MiB per buffer.  Small volumes use one full-extent block."""
    max_rows = max(_LANE, _TARGET_OUT_BLOCK_BYTES // max(1, n_pad * out_elem_bytes))
    ts = min(_MAX_TILE_ROWS, max_rows)
    ts = max(_LANE, (ts // _LANE) * _LANE)
    if s <= ts:
        return s          # full-extent block (allowed by Pallas even if < 128)
    return ts


@functools.partial(jax.jit, static_argnames=("stride", "compute_dtype"))
def upsampling_deconv_block(x, weight, bias, *, stride=None,
                            compute_dtype=jnp.bfloat16):
    """x: [B, Cin, D, H, W]; weight: [Cin, Cout, k, k, k]; bias: [Cout].

    Matches nn.ConvTranspose3d(Cin, Cout, k, stride=k, padding=0) + ReLU, which
    requires kernel_size == stride (the module's calling convention)."""
    B, Cin, D, H, W = x.shape
    Cout, k = weight.shape[1], weight.shape[2]
    assert weight.shape[0] == Cin and weight.shape[2:] == (k, k, k), "cubic kernel expected"
    if stride is not None:
        assert k == stride, "single-matmul decomposition requires kernel_size == stride"
    kcube = k * k * k

    out_dtype = x.dtype
    out_elem_bytes = jnp.dtype(out_dtype).itemsize

    # ---- plain-JAX glue (free reshapes / tiny weight reshape only) ----
    S = D * H * W
    x3 = x.reshape(B, Cin, S)                                      # channels-first, free
    w_mat = weight.reshape(Cin, Cout * kcube)                      # col = co*k^3 + kd*k^2 + kh*k + kw
    b_vec = jnp.repeat(bias, kcube)                                # matches column order

    N = Cout * kcube
    N_pad = pl.cdiv(N, _LANE) * _LANE                              # lane-dense stores for any Cout
    if N_pad != N:
        w_mat = jnp.pad(w_mat, ((0, 0), (0, N_pad - N)))
        b_vec = jnp.pad(b_vec, (0, N_pad - N))

    TS = _spatial_tile(S, N_pad, out_elem_bytes)
    S_pad = pl.cdiv(S, TS) * TS
    if S_pad != S:
        x3 = jnp.pad(x3, ((0, 0), (0, 0), (0, S_pad - S)))

    # bf16 (or f32) matmul inputs; bias stays f32 for the epilogue.
    x3 = x3.astype(compute_dtype)
    w_mat = w_mat.astype(compute_dtype)
    b_mat = b_vec.astype(jnp.float32)[None, :]

    grid = (B, S_pad // TS)
    in_bytes = jnp.dtype(compute_dtype).itemsize
    cost = pl.CostEstimate(
        flops=2 * B * S_pad * Cin * N_pad,
        transcendentals=0,
        bytes_accessed=(B * S_pad * Cin * in_bytes
                        + Cin * N_pad * in_bytes
                        + N_pad * 4
                        + B * S_pad * N_pad * out_elem_bytes))

    y = pl.pallas_call(
        _deconv_relu_kernel,
        out_shape=jax.ShapeDtypeStruct((B, S_pad, N_pad), out_dtype),
        grid_spec=pltpu.PrefetchScalarGridSpec(
            num_scalar_prefetch=0,
            grid=grid,
            in_specs=[
                pl.BlockSpec((None, Cin, TS), lambda b, s: (b, 0, s)),   # activations
                pl.BlockSpec((Cin, N_pad), lambda b, s: (0, 0)),         # weight (resident)
                pl.BlockSpec((1, N_pad), lambda b, s: (0, 0)),           # bias (resident)
            ],
            out_specs=pl.BlockSpec((None, TS, N_pad), lambda b, s: (b, s, 0)),
        ),
        compiler_params=pltpu.CompilerParams(
            dimension_semantics=("parallel", "parallel")),
        cost_estimate=cost,
    )(x3, w_mat, b_mat)

    # ---- plain-JAX glue: scatter (B, S, Cout*k^3) back to NCDHW upsampled volume ----
    y = y[:, :S, :N]
    y = y.reshape(B, D, H, W, Cout, k, k, k)
    y = jnp.transpose(y, (0, 4, 1, 5, 2, 6, 3, 7))     # B, Cout, D,kd, H,kh, W,kw
    y = y.reshape(B, Cout, D * k, H * k, W * k)
    return y


def reference_forward(x, weight, bias):
    """Pure-JAX reference for ConvTranspose3d(kernel_size=stride, padding=0) + ReLU."""
    B, Cin, D, H, W = x.shape
    Cout, k = weight.shape[1], weight.shape[2]
    y = jnp.einsum('bcdhw,coxyz->bodxhywz', x, weight)
    y = y.reshape(B, Cout, D * k, H * k, W * k)
    y = y + bias[None, :, None, None, None]
    return jnp.maximum(y, 0.0)


def init_params(key, n_filters_in, n_filters_out, stride):
    kw, kb = jax.random.split(key)
    weight = jax.random.normal(
        kw, (n_filters_in, n_filters_out, stride, stride, stride), jnp.float32) * 0.1
    bias = jax.random.normal(kb, (n_filters_out,), jnp.float32) * 0.1
    return weight, bias


if __name__ == "__main__":
    key = jax.random.PRNGKey(0)
    k_x, k_p = jax.random.split(key)

    # small shapes consistent with the module
    B, Cin, Cout = 2, 16, 16
    D = H = W = 4
    stride = 2

    x = jax.random.normal(k_x, (B, Cin, D, H, W), jnp.float32)
    weight, bias = init_params(k_p, Cin, Cout, stride)

    ref = reference_forward(x, weight, bias)

    # f32 compute path: exact check against the f32 reference.
    out_f32 = upsampling_deconv_block(x, weight, bias, stride=stride,
                                      compute_dtype=jnp.float32)
    out_f32 = jax.block_until_ready(out_f32)
    assert out_f32.shape == (B, Cout, D * stride, H * stride, W * stride)
    assert jnp.allclose(out_f32, ref, atol=1e-5, rtol=1e-5), "f32 mismatch vs reference"

    # bf16-input (default, bandwidth-optimized) path: loose tolerance vs f32 reference.
    out_bf16 = upsampling_deconv_block(x, weight, bias, stride=stride)
    out_bf16 = jax.block_until_ready(out_bf16)
    assert out_bf16.shape == (B, Cout, D * stride, H * stride, W * stride)
    assert jnp.allclose(out_bf16, ref, atol=5e-2, rtol=5e-2), "bf16 mismatch vs reference"

    print("KERNEL_OK")
</pallas_src>

<mosaic_0001>
module attributes {stable_mosaic.version = 11 : i64} {
  func.func @_deconv_relu_kernel(%arg0: i32, %arg1: i32, %arg2: memref<1x16x64xf32, #tpu.memory_space<vmem>>, %arg3: memref<16x128xf32, #tpu.memory_space<vmem>>, %arg4: memref<1x128xf32, #tpu.memory_space<vmem>>, %arg5: memref<1x64x128xf32, #tpu.memory_space<vmem>>) attributes {dimension_semantics = [#tpu.dimension_semantics<parallel>, #tpu.dimension_semantics<parallel>], iteration_bounds = array<i64: 2, 1>, scalar_prefetch = 0 : i64, scratch_operands = 0 : i64, tpu.core_type = #tpu.core_type<tc>, window_params = [{transform_indices = @transform_0, window_bounds = array<i64: 1, 16, 64>}, {pipeline_mode = #tpu.pipeline_mode<synchronous>, transform_indices = @transform_1, window_bounds = array<i64: 16, 128>}, {pipeline_mode = #tpu.pipeline_mode<synchronous>, transform_indices = @transform_2, window_bounds = array<i64: 1, 128>}, {transform_indices = @transform_3, window_bounds = array<i64: 1, 64, 128>}]} {
    %c0 = arith.constant 0 : index
    %c0_0 = arith.constant 0 : index
    %c0_1 = arith.constant 0 : index
    %0 = vector.load %arg2[%c0, %c0_0, %c0_1] : memref<1x16x64xf32, #tpu.memory_space<vmem>>, vector<1x16x64xf32>
    %1 = vector.shape_cast %0 : vector<1x16x64xf32> to vector<16x64xf32>
    %c0_2 = arith.constant 0 : index
    %c0_3 = arith.constant 0 : index
    %2 = vector.load %arg3[%c0_2, %c0_3] : memref<16x128xf32, #tpu.memory_space<vmem>>, vector<16x128xf32>
    %cst = arith.constant dense<0.000000e+00> : vector<64x128xf32>
    %3 = tpu.matmul %1, %2, %cst {dimension_numbers = #tpu.dot_dimension_numbers<[0], [0], [1], [1], [0, 1, 1, 1], [], []>} : vector<16x64xf32>, vector<16x128xf32>, vector<64x128xf32> -> vector<64x128xf32>
    %c0_4 = arith.constant 0 : index
    %c0_5 = arith.constant 0 : index
    %4 = vector.load %arg4[%c0_4, %c0_5] : memref<1x128xf32, #tpu.memory_space<vmem>>, vector<1x128xf32>
    %5 = vector.broadcast %4 : vector<1x128xf32> to vector<64x128xf32>
    %6 = arith.addf %3, %5 : vector<64x128xf32>
    %cst_6 = arith.constant 0.000000e+00 : f32
    %7 = vector.broadcast %cst_6 : f32 to vector<64x128xf32>
    %8 = arith.maximumf %6, %7 : vector<64x128xf32>
    %c0_7 = arith.constant 0 : index
    %c0_8 = arith.constant 0 : index
    %c0_9 = arith.constant 0 : index
    %9 = vector.load %arg5[%c0_7, %c0_8, %c0_9] : memref<1x64x128xf32, #tpu.memory_space<vmem>>, vector<1x64x128xf32>
    %10 = vector.shape_cast %9 : vector<1x64x128xf32> to vector<64x128xf32>
    %11 = vector.shape_cast %8 : vector<64x128xf32> to vector<1x64x128xf32>
    tpu.vector_store %arg5[%c0_7, %c0_8, %c0_9], %11 {strides = array<i32>} : memref<1x64x128xf32, #tpu.memory_space<vmem>>, vector<1x64x128xf32>,
    return
  }
  func.func @transform_0(%arg0: i32, %arg1: i32) -> (i32, i32, i32) {
    %c0_i32 = arith.constant 0 : i32
    %c0_i32_0 = arith.constant 0 : i32
    return %arg0, %c0_i32, %arg1 : i32, i32, i32
  }
  func.func @transform_1(%arg0: i32, %arg1: i32) -> (i32, i32) {
    %c0_i32 = arith.constant 0 : i32
    %c0_i32_0 = arith.constant 0 : i32
    %c0_i32_1 = arith.constant 0 : i32
    return %c0_i32, %c0_i32_0 : i32, i32
  }
  func.func @transform_2(%arg0: i32, %arg1: i32) -> (i32, i32) {
    %c0_i32 = arith.constant 0 : i32
    %c0_i32_0 = arith.constant 0 : i32
    %c0_i32_1 = arith.constant 0 : i32
    return %c0_i32, %c0_i32_0 : i32, i32
  }
  func.func @transform_3(%arg0: i32, %arg1: i32) -> (i32, i32, i32) {
    %c0_i32 = arith.constant 0 : i32
    %c0_i32_0 = arith.constant 0 : i32
    return %arg0, %arg1, %c0_i32 : i32, i32, i32
  }
}

</mosaic_0001>

<llo_original>
// kernel: upsampling_deconv_block.1
$region0: #{upsampling_deconv_block.1}
  #allocation0 [shape = 'u32[]', space=smem, size = 0x4, offset = 0x4, fixed_abs, tag = 'smem constant byte address 0x4 - core index']
  #allocation1 [shape = 'u32[144,128]{1,0:T(1,128)}', space=vmem, size = 0x12000, scoped, tag = 'internal scratch']
  %s0 = inlined_call_operand.vmem [shape: f32[2,16,64], index: 0, kind: input, shape index: {}]
  %s1 = inlined_call_operand.vmem [shape: f32[16,128], index: 1, kind: input, shape index: {}]
  %s2 = inlined_call_operand.vmem [shape: f32[1,128], index: 2, kind: input, shape index: {}]
  %s3 = inlined_call_operand.vmem [shape: f32[2,64,128], index: 3, kind: output, shape index: {}]
  %s4 = sld [smem:[#allocation0]]
  $region45: #{upsampling_deconv_block.1} parent=0
    _
  %s6 = ssub.s32 1, %s4
  %s7 = scalar_select 0, %s6, %s4
  loop: start=0, step=1, limit=4
  $region2: #{upsampling_deconv_block.1} parent=0 // loop_pre_header
    _
  $region3: #{upsampling_deconv_block.1} parent=0 // loop_header
    %s9 = sphi 0, %s13
    %p10 = scmp.ge.s32.totalorder %s9, 4
    %s16 = sphi 0, %s28
    %s17 = sphi 0, %s24
    %s18 = sphi 0, %s16
    %s19 = sphi 0, %s17
    %s20 = sphi 0, %s18
    %s21 = sphi 0, %s19
    %s33 = sphi 0, %s35
    %s36 = sphi 0, %s33
    %s37 = sphi 0, %s36
    %s53 = sphi 0, %s37
    %s57 = sphi 0, %s57
    %s59 = sphi 0, %s57
    %s60 = sphi 0, %s59
    %s74 = sphi 0, %s60
    %s78 = sphi 0, %s78
    %s80 = sphi 0, %s78
    %s81 = sphi 0, %s80
    %s95 = sphi 0, %s81
    %s103 = sphi 0, %s105
    %s106 = sphi 0, %s103
    %s107 = sphi 0, %s106
    %s123 = sphi 0, %s107
  $region4: #{upsampling_deconv_block.1} parent=0 // loop_header_branch
    %12 = sbr.rel (%p10) target = $region8
  $region5: #{upsampling_deconv_block.1} parent=0 // loop_body
    %s14 = ssub.s32 %s9, 1
    %s15 = ssub.s32 %s9, 2
    %s22 = sadd.s32 1, %s17
    %p23 = scmp.ge.s32.totalorder %s22, 1
    %s24 = scalar_select %p23, 0, %s22
    %s25 = sadd.s32 1, %s16
    %s26 = scalar_select %p23, %s25, %s16
    %p27 = scmp.ge.s32.totalorder %s26, 2
    %s28 = scalar_select %p27, 0, %s26
    %s29 = ssub.s32 %s16, %s28
    %s30 = ssub.s32 %s17, %s24
    %s31 = sor.u32 %s29, %s30
    %p32 = scmp.eq.s32.totalorder %s31, 0
    %s34 = sadd.s32 %s33, 1
    %s35 = scalar_select %p32, %s33, %s34
    %p38 = pneg %p32
    %p39 = scmp.eq.s32.totalorder %s9, 1
    %p40 = por %p38, %p39
    %p41 = scmp.ne.s32.totalorder %s33, %s36
    %p42 = scmp.eq.s32.totalorder %s9, 0
    %p43 = por %p41, %p42
    %p44 = scmp.ne.s32.totalorder %s33, %s36
    %p45 = scmp.eq.s32.totalorder %s14, 1
    %p46 = por %p44, %p45
    %p47 = scmp.ne.s32.totalorder %s36, %s37
    %p48 = scmp.eq.s32.totalorder %s14, 0
    %p49 = por %p47, %p48
    %p50 = scmp.ne.s32.totalorder %s36, %s37
    %p51 = scmp.eq.s32.totalorder %s15, 1
    %p52 = por %p50, %p51
    %p54 = scmp.ne.s32.totalorder %s37, %s53
    %p55 = scmp.eq.s32.totalorder %s15, 0
    %p56 = por %p54, %p55
    %s58 = sadd.s32 %s57, 1
    %p61 = scmp.eq.s32.totalorder %s9, 1
    %p62 = scmp.ne.s32.totalorder %s57, %s59
    %p63 = scmp.eq.s32.totalorder %s9, 0
    %p64 = por %p62, %p63
    %p65 = scmp.ne.s32.totalorder %s57, %s59
    %p66 = scmp.eq.s32.totalorder %s14, 1
    %p67 = por %p65, %p66
    %p68 = scmp.ne.s32.totalorder %s59, %s60
    %p69 = scmp.eq.s32.totalorder %s14, 0
    %p70 = por %p68, %p69
    %p71 = scmp.ne.s32.totalorder %s59, %s60
    %p72 = scmp.eq.s32.totalorder %s15, 1
    %p73 = por %p71, %p72
    %p75 = scmp.ne.s32.totalorder %s60, %s74
    %p76 = scmp.eq.s32.totalorder %s15, 0
    %p77 = por %p75, %p76
    %s79 = sadd.s32 %s78, 1
    %p82 = scmp.eq.s32.totalorder %s9, 1
    %p83 = scmp.ne.s32.totalorder %s78, %s80
    %p84 = scmp.eq.s32.totalorder %s9, 0
    %p85 = por %p83, %p84
    %p86 = scmp.ne.s32.totalorder %s78, %s80
    %p87 = scmp.eq.s32.totalorder %s14, 1
    %p88 = por %p86, %p87
    %p89 = scmp.ne.s32.totalorder %s80, %s81
    %p90 = scmp.eq.s32.totalorder %s14, 0
    %p91 = por %p89, %p90
    %p92 = scmp.ne.s32.totalorder %s80, %s81
    %p93 = scmp.eq.s32.totalorder %s15, 1
    %p94 = por %p92, %p93
    %p96 = scmp.ne.s32.totalorder %s81, %s95
    %p97 = scmp.eq.s32.totalorder %s15, 0
    %p98 = por %p96, %p97
    %s99 = ssub.s32 %s16, %s28
    %s100 = ssub.s32 %s17, %s24
    %s101 = sor.u32 %s99, %s100
    %p102 = scmp.eq.s32.totalorder %s101, 0
    %s104 = sadd.s32 %s103, 1
    %s105 = scalar_select %p102, %s103, %s104
    %p108 = pneg %p102
    %p109 = scmp.eq.s32.totalorder %s9, 1
    %p110 = por %p108, %p109
    %p111 = scmp.ne.s32.totalorder %s103, %s106
    %p112 = scmp.eq.s32.totalorder %s9, 0
    %p113 = por %p111, %p112
    %p114 = scmp.ne.s32.totalorder %s103, %s106
    %p115 = scmp.eq.s32.totalorder %s14, 1
    %p116 = por %p114, %p115
    %p117 = scmp.ne.s32.totalorder %s106, %s107
    %p118 = scmp.eq.s32.totalorder %s14, 0
    %p119 = por %p117, %p118
    %p120 = scmp.ne.s32.totalorder %s106, %s107
    %p121 = scmp.eq.s32.totalorder %s15, 1
    %p122 = por %p120, %p121
    %p124 = scmp.ne.s32.totalorder %s107, %s123
    %p125 = scmp.eq.s32.totalorder %s15, 0
    %p126 = por %p124, %p125
    %p127 = scmp.le.s32.totalorder 1, %s9
    %p128 = scmp.lt.s32.totalorder %s9, 3
    %p129 = pnand %p127, %p128
    %p130 = pneg %p129
    // Predicated region
    $region9: #{upsampling_deconv_block.1} parent=5 // pred_check
      _
    $region10: #{upsampling_deconv_block.1} parent=5 // pred_check_branch
      %132 = sbr.rel (%p129) target = $region12
    $region11: #{upsampling_deconv_block.1} parent=5 // pred_region
      %s133 = ssub.s32 %s9, 1
      // Predicated region
      $region13: #{upsampling_deconv_block.1} parent=11 // pred_check
        %p134 = pneg %p70
      $region14: #{upsampling_deconv_block.1} parent=11 // pred_check_branch
        %136 = sbr.rel (%p134) target = $region16
      $region15: #{upsampling_deconv_block.1} parent=11 // pred_region
        _
      $region16: #{upsampling_deconv_block.1} parent=11 // pred_fallthru
        _
      // Predicated region
      $region17: #{upsampling_deconv_block.1} parent=11 // pred_check
        %p137 = pneg %p91
      $region18: #{upsampling_deconv_block.1} parent=11 // pred_check_branch
        %139 = sbr.rel (%p137) target = $region20
      $region19: #{upsampling_deconv_block.1} parent=11 // pred_region
        _
      $region20: #{upsampling_deconv_block.1} parent=11 // pred_fallthru
        _
    $region12: #{upsampling_deconv_block.1} parent=5 // pred_fallthru
      _
    %p140 = scmp.lt.s32.totalorder %s9, 2
    // Predicated region
    $region21: #{upsampling_deconv_block.1} parent=5 // pred_check
      %p141 = pneg %p140
    $region22: #{upsampling_deconv_block.1} parent=5 // pred_check_branch
      %143 = sbr.rel (%p141) target = $region24
    $region23: #{upsampling_deconv_block.1} parent=5 // pred_region
      // Predicated region
      $region25: #{upsampling_deconv_block.1} parent=23 // pred_check
        %p144 = pneg %p43
      $region26: #{upsampling_deconv_block.1} parent=23 // pred_check_branch
        %146 = sbr.rel (%p144) target = $region28
      $region27: #{upsampling_deconv_block.1} parent=23 // pred_region
        %p147 = scmp.lt.s32.totalorder %s16, 1
        %s148 = scalar_select %p147, %s16, 1
        %p149 = scmp.lt.s32.totalorder %s17, 0
        %s150 = scalar_select %p149, %s17, 0
        %s151 = smul.addr %s148, 2
        %s152 = sadd.s32 %s150, %s151
        %s153 = smul.addr %s152, 8
        %s154 = scalar_lea.vmem %s0, %s153
      $region28: #{upsampling_deconv_block.1} parent=23 // pred_fallthru
        _
    $region24: #{upsampling_deconv_block.1} parent=5 // pred_fallthru
      _
    %p155 = scmp.le.s32.totalorder 1, %s9
    %p156 = scmp.lt.s32.totalorder %s9, 3
    %p157 = pnand %p155, %p156
    %p158 = pneg %p157
    // Predicated region
    $region29: #{upsampling_deconv_block.1} parent=5 // pred_check
      _
    $region30: #{upsampling_deconv_block.1} parent=5 // pred_check_branch
      %160 = sbr.rel (%p157) target = $region32
    $region31: #{upsampling_deconv_block.1} parent=5 // pred_region
      %s161 = ssub.s32 %s9, 1
      %p162 = scmp.lt.s32.totalorder %s18, 1
      %s163 = scalar_select %p162, %s18, 1
      %p164 = scmp.lt.s32.totalorder %s19, 0
      %s165 = scalar_select %p164, %s19, 0
      %s166 = smul.addr %s163, 2
      %s167 = sadd.s32 %s165, %s166
      %s168 = smul.addr %s167, 8
      %s169 = scalar_lea.vmem %s0, %s168
      %p170 = pneg %p49
      %p171 = pneg %p46
      %p172 = pneg %p70
      %p173 = pneg %p67
      %p174 = pneg %p91
      %p175 = pneg %p88
      %p176 = pneg %p119
      %p177 = pneg %p116
      %s178 = smul.u32 8, %s19
      %p179 = scmp.lt.s32.totalorder %s18, 1
      %s180 = scalar_select %p179, %s18, 1
      %p181 = scmp.lt.s32.totalorder %s178, 7
      %s182 = scalar_select %p181, %s178, 7
      %s183 = smul.addr %s180, 8
      %s184 = sadd.s32 %s182, %s183
      %s185 = smul.addr %s184, 8
      %s186 = scalar_lea.vmem %s3, %s185
      %p187 = scmp.lt.s32.totalorder %s18, 1
      %s188 = scalar_select %p187, %s18, 1
      %p189 = scmp.lt.s32.totalorder %s19, 0
      %s190 = scalar_select %p189, %s19, 0
      %s191 = smul.addr %s188, 2
      %s192 = sadd.s32 %s190, %s191
      %s193 = smul.addr %s192, 8
      %s194 = scalar_lea.vmem %s0, %s193
      %s195 = smul.u32 8, %s19
      %p196 = scmp.lt.s32.totalorder %s18, 1
      %s197 = scalar_select %p196, %s18, 1
      %p198 = scmp.lt.s32.totalorder %s195, 7
      %s199 = scalar_select %p198, %s195, 7
      %s200 = smul.addr %s197, 8
      %s201 = sadd.s32 %s199, %s200
      %s202 = smul.addr %s201, 8
      %s203 = scalar_lea.vmem %s3, %s202
      %s204 = smul.u32 8, %s19
      %v205 = vld [vmem:[%s194] sm:$0xff]
      %v206 = vld [vmem:[%s194 + $0x8] sm:$0xff]
      %v207 = vld [vmem:[%s1] sm:$0xff]
      %v208 = vld [vmem:[%s1 + $0x8] sm:$0xff]
      %v209 = vld [vmem:[%s2] sm:$0x1]
      %v211 = vlaneseq
      %v212 = vshrl.u32 %v211, 7
      %v213 = vsub.s32 0, %v212
      %v214 = vrot.slane %v209, %v213
      %216 = vxpose.xlu0.b32.start [1/16] %v205, 128
      %217 = vxpose.xlu0.b32.cont [2/16] %v206, 128
      %218 = vxpose.xlu0.b32.cont [3/16] 0.0, 128
      %219 = vxpose.xlu0.b32.cont [4/16] 0.0, 128
      %220 = vxpose.xlu0.b32.cont [5/16] 0.0, 128
      %221 = vxpose.xlu0.b32.cont [6/16] 0.0, 128
      %222 = vxpose.xlu0.b32.cont [7/16] 0.0, 128
      %223 = vxpose.xlu0.b32.cont [8/16] 0.0, 128
      %224 = vxpose.xlu0.b32.cont [9/16] 0.0, 128
      %225 = vxpose.xlu0.b32.cont [10/16] 0.0, 128
      %226 = vxpose.xlu0.b32.cont [11/16] 0.0, 128
      %227 = vxpose.xlu0.b32.cont [12/16] 0.0, 128
      %228 = vxpose.xlu0.b32.cont [13/16] 0.0, 128
      %229 = vxpose.xlu0.b32.cont [14/16] 0.0, 128
      %230 = vxpose.xlu0.b32.cont [15/16] 0.0, 128
      %231 = vxpose.xlu0.b32.end [16/16] 0.0, 128
      %v232 = vpop.trf.xlu0
      %v233 = vpop.trf.xlu0
      %v234 = vpop.trf.xlu0
      %v235 = vpop.trf.xlu0
      %v236 = vpop.trf.xlu0
      %v237 = vpop.trf.xlu0
      %v238 = vpop.trf.xlu0
      %v239 = vpop.trf.xlu0
      %v240 = vpop.trf.xlu0
      %v241 = vpop.trf.xlu0
      %v242 = vpop.trf.xlu0
      %v243 = vpop.trf.xlu0
      %v244 = vpop.trf.xlu0
      %v245 = vpop.trf.xlu0
      %v246 = vpop.trf.xlu0
      %v247 = vpop.trf.xlu0
      %vm248 = vcmask 130048
      %v250 = vsel %vm248, %v232, 0
      %v253 = vsel %vm248, %v233, 0
      %v256 = vsel %vm248, %v234, 0
      %v259 = vsel %vm248, %v235, 0
      %v262 = vsel %vm248, %v236, 0
      %v265 = vsel %vm248, %v237, 0
      %v268 = vsel %vm248, %v238, 0
      %v271 = vsel %vm248, %v239, 0
      %273 = vmatprep.subr.mxu0 0.0
      %274 = vmatpush1.msra.mxu0 0.0
      %275 = vmatprep.subr.mxu0 0.0
      %276 = vmatpush1.msra.mxu0 0.0
      %277 = vmatprep.subr.mxu0 0.0
      %278 = vmatpush1.msra.mxu0 0.0
      %279 = vmatprep.subr.mxu0 0.0
      %280 = vmatpush1.msra.mxu0 0.0
      %281 = vmatprep.subr.mxu0 0.0
      %282 = vmatpush1.msra.mxu0 0.0
      %283 = vmatprep.subr.mxu0 0.0
      %284 = vmatpush1.msra.mxu0 0.0
      %285 = vmatprep.subr.mxu0 0.0
      %286 = vmatpush1.msra.mxu0 0.0
      %287 = vmatprep.subr.mxu0 0.0
      %288 = vmatpush1.msra.mxu0 0.0
      %289 = vmatprep.subr.mxu0 0.0
      %290 = vmatpush1.msra.mxu0 0.0
      %291 = vmatprep.subr.mxu0 0.0
      %292 = vmatpush1.msra.mxu0 0.0
      %293 = vmatprep.subr.mxu0 0.0
      %294 = vmatpush1.msra.mxu0 0.0
      %295 = vmatprep.subr.mxu0 0.0
      %296 = vmatpush1.msra.mxu0 0.0
      %297 = vmatprep.subr.mxu0 0.0
      %298 = vmatpush1.msra.mxu0 0.0
      %299 = vmatprep.subr.mxu0 0.0
      %300 = vmatpush1.msra.mxu0 0.0
      %301 = vmatprep.subr.mxu0 0.0
      %302 = vmatpush1.msra.mxu0 %v208
      %303 = vmatprep.subr.mxu0 0.0
      %304 = vmatpush1.msra.mxu0 %v207
      %305 = vmatprep.subr.mxu0 0.0
      %306 = vmatpush2.msra.mxu0 0.0
      %307 = vmatprep.subr.mxu0 0.0
      %308 = vmatpush2.msra.mxu0 0.0
      %309 = vmatprep.subr.mxu0 0.0
      %310 = vmatpush2.msra.mxu0 0.0
      %311 = vmatprep.subr.mxu0 0.0
      %312 = vmatpush2.msra.mxu0 0.0
      %313 = vmatprep.subr.mxu0 0.0
      %314 = vmatpush2.msra.mxu0 0.0
      %315 = vmatprep.subr.mxu0 0.0
      %316 = vmatpush2.msra.mxu0 0.0
      %317 = vmatprep.subr.mxu0 0.0
      %318 = vmatpush2.msra.mxu0 0.0
      %319 = vmatprep.subr.mxu0 0.0
      %320 = vmatpush2.msra.mxu0 0.0
      %321 = vmatprep.subr.mxu0 0.0
      %322 = vmatpush2.msra.mxu0 0.0
      %323 = vmatprep.subr.mxu0 0.0
      %324 = vmatpush2.msra.mxu0 0.0
      %325 = vmatprep.subr.mxu0 0.0
      %326 = vmatpush2.msra.mxu0 0.0
      %327 = vmatprep.subr.mxu0 0.0
      %328 = vmatpush2.msra.mxu0 0.0
      %329 = vmatprep.subr.mxu0 0.0
      %330 = vmatpush2.msra.mxu0 0.0
      %331 = vmatprep.subr.mxu0 0.0
      %332 = vmatpush2.msra.mxu0 0.0
      %333 = vmatprep.subr.mxu0 0.0
      %334 = vmatpush2.msra.mxu0 0.0
      %335 = vmatprep.subr.mxu0 0.0
      %336 = vmatpush2.msra.mxu0 0.0
      %337 = vmatprep.mubr.f32.mxu0 0.0
      %338 = vmatmul.mubr.f32.gmra.mxu0 %v250
      %v339 = vpop.f32.mrf.mxu0
      %v340 = vadd.f32 %v214, %v339
      %v341 = vpop.f32.mrf.mxu0
      %342 = vmatprep.mubr.f32.mxu0 0.0
      %343 = vmatmul.mubr.f32.gmra.mxu0 %v253
      %v344 = vpop.f32.mrf.mxu0
      %v345 = vadd.f32 %v214, %v344
      %v346 = vpop.f32.mrf.mxu0
      %347 = vmatprep.mubr.f32.mxu0 0.0
      %348 = vmatmul.mubr.f32.gmra.mxu0 %v256
      %v349 = vpop.f32.mrf.mxu0
      %v350 = vadd.f32 %v214, %v349
      %v351 = vpop.f32.mrf.mxu0
      %352 = vmatprep.mubr.f32.mxu0 0.0
      %353 = vmatmul.mubr.f32.gmra.mxu0 %v259
      %v354 = vpop.f32.mrf.mxu0
      %v355 = vadd.f32 %v214, %v354
      %v356 = vpop.f32.mrf.mxu0
      %357 = vmatprep.mubr.f32.mxu0 0.0
      %358 = vmatmul.mubr.f32.gmra.mxu0 %v262
      %v359 = vpop.f32.mrf.mxu0
      %v360 = vadd.f32 %v214, %v359
      %v361 = vpop.f32.mrf.mxu0
      %362 = vmatprep.mubr.f32.mxu0 0.0
      %363 = vmatmul.mubr.f32.gmra.mxu0 %v265
      %v364 = vpop.f32.mrf.mxu0
      %v365 = vadd.f32 %v214, %v364
      %v366 = vpop.f32.mrf.mxu0
      %367 = vmatprep.mubr.f32.mxu0 0.0
      %368 = vmatmul.mubr.f32.gmra.mxu0 %v268
      %v369 = vpop.f32.mrf.mxu0
      %v370 = vadd.f32 %v214, %v369
      %v371 = vpop.f32.mrf.mxu0
      %372 = vmatprep.mubr.f32.mxu0 0.0
      %373 = vmatmul.mubr.f32.gmra.mxu0 %v271
      %v374 = vpop.f32.mrf.mxu0
      %v375 = vadd.f32 %v214, %v374
      %v376 = vpop.f32.mrf.mxu0
      %377 = vdwg.mxu0
      %v378 = vmax.f32 %v340, 0.0
      %v379 = vmax.f32 %v345, 0.0
      %v380 = vmax.f32 %v350, 0.0
      %v381 = vmax.f32 %v355, 0.0
      %v382 = vmax.f32 %v360, 0.0
      %v383 = vmax.f32 %v365, 0.0
      %v384 = vmax.f32 %v370, 0.0
      %v385 = vmax.f32 %v375, 0.0
      %386 = vst [vmem:[%s203] sm:$0xff] %v378
      %387 = vst [vmem:[%s203 + $0x8] sm:$0xff] %v379
      %388 = vst [vmem:[%s203 + $0x10] sm:$0xff] %v380
      %389 = vst [vmem:[%s203 + $0x18] sm:$0xff] %v381
      %390 = vst [vmem:[%s203 + $0x20] sm:$0xff] %v382
      %391 = vst [vmem:[%s203 + $0x28] sm:$0xff] %v383
      %392 = vst [vmem:[%s203 + $0x30] sm:$0xff] %v384
      %393 = vst [vmem:[%s203 + $0x38] sm:$0xff] %v385
      %s394 = smul.u32 8, %s19
      %p395 = scmp.lt.s32.totalorder %s18, 1
      %s396 = scalar_select %p395, %s18, 1
      %p397 = scmp.lt.s32.totalorder %s394, 7
      %s398 = scalar_select %p397, %s394, 7
      %s399 = smul.addr %s396, 8
      %s400 = sadd.s32 %s398, %s399
      %s401 = smul.addr %s400, 8
      %s402 = scalar_lea.vmem %s3, %s401
      // Predicated region
      $region33: #{upsampling_deconv_block.1} parent=31 // pred_check
        %p403 = pneg %p116
      $region34: #{upsampling_deconv_block.1} parent=31 // pred_check_branch
        %405 = sbr.rel (%p403) target = $region36
      $region35: #{upsampling_deconv_block.1} parent=31 // pred_region
        %s406 = smul.u32 8, %s19
      $region36: #{upsampling_deconv_block.1} parent=31 // pred_fallthru
        _
    $region32: #{upsampling_deconv_block.1} parent=5 // pred_fallthru
      _
    %p407 = scmp.le.s32.totalorder 2, %s9
    // Predicated region
    $region37: #{upsampling_deconv_block.1} parent=5 // pred_check
      %p408 = pneg %p407
    $region38: #{upsampling_deconv_block.1} parent=5 // pred_check_branch
      %410 = sbr.rel (%p408) target = $region40
    $region39: #{upsampling_deconv_block.1} parent=5 // pred_region
      %s411 = ssub.s32 %s9, 2
      // Predicated region
      $region41: #{upsampling_deconv_block.1} parent=39 // pred_check
        %p412 = pneg %p122
      $region42: #{upsampling_deconv_block.1} parent=39 // pred_check_branch
        %414 = sbr.rel (%p412) target = $region44
      $region43: #{upsampling_deconv_block.1} parent=39 // pred_region
        %s415 = smul.u32 8, %s21
        %p416 = scmp.lt.s32.totalorder %s20, 1
        %s417 = scalar_select %p416, %s20, 1
        %p418 = scmp.lt.s32.totalorder %s415, 7
        %s419 = scalar_select %p418, %s415, 7
        %s420 = smul.addr %s417, 8
        %s421 = sadd.s32 %s419, %s420
        %s422 = smul.addr %s421, 8
        %s423 = scalar_lea.vmem %s3, %s422
      $region44: #{upsampling_deconv_block.1} parent=39 // pred_fallthru
        _
    $region40: #{upsampling_deconv_block.1} parent=5 // pred_fallthru
      _
  $region6: #{upsampling_deconv_block.1} parent=0 // loop_footer
    %s13 = sadd.s32 1, %s9
  $region7: #{upsampling_deconv_block.1} parent=0 // loop_footer_branch
    %8 = sbr.rel target = $region3
  $region8: #{upsampling_deconv_block.1} parent=0 // loop_exit
    _

</llo_original>
